<compile_context>
chip_gen: v5e
topology: v5e:2x2
jax: 0.10.0
libtpu: 0.0.40
codegen_flags: <defaults>
</compile_context>

<pallas_src>
import functools

import jax
import jax.numpy as jnp
from jax.experimental import pallas as pl
from jax.experimental.pallas import tpu as pltpu


def _cdiv(a, b):
    return -(-a // b)


def _round_up(a, b):
    return _cdiv(a, b) * b


def _vmem_budget_bytes():
    """Per-generation VMEM budget with headroom below the physical capacity."""
    try:
        phys = pltpu.get_tpu_info().vmem_capacity_bytes
    except Exception:
        phys = 64 * 1024 * 1024          # conservative default (v7x: 64 MiB/TC)
    # ~48 MiB on v7x (64 MiB physical); capped at 80 MiB on v5e/v6e (128 MiB)
    # to leave headroom for Mosaic internal scratch.
    return int(min(phys * 3 // 4, 80 * 1024 * 1024))


def _pick_tiles(n, fcat, budget_bytes):
    """Row/column tiles for the attention pass.

    Per-grid-step VMEM (bytes):
      adj tile  (int8, double-buffered)            2  * TM * TN
      f32 temporaries (logits/lrelu/p, ~5 live)    20 * TM * TN
      out tile (2 bufs) + acc scratch              12 * TM * Fcat
      seq tile  (bf16, double-buffered)            4  * TN * Fcat
    TM must be a multiple of 32 (int8 sublane packing), TN a multiple of 128.
    """
    tn = min(_round_up(n, 128), 1024)
    per_row = 22 * tn + 12 * fcat + 16
    fixed = 4 * tn * fcat + 8 * tn
    usable = max(int(budget_bytes * 0.7) - fixed, 32 * per_row)
    tm_cap = max(32, (usable // per_row) // 32 * 32)
    n_r = _round_up(n, 32)
    if tm_cap >= n_r:
        tm = n_r
    else:
        # Balance row blocks so padding waste stays small.
        nblk = _cdiv(n_r, tm_cap)
        tm = _round_up(_cdiv(n_r, nblk), 32)
    return tm, tn


def _projection_kernel(x_ref, w_ref, proj_ref):
    # Single fused MXU pass: seq_fts, f1 and f2 all come out of one matmul.
    proj_ref[...] = jnp.dot(x_ref[...], w_ref[...],
                            preferred_element_type=jnp.float32)


def _attention_kernel(adj_ref, f1_ref, f2_ref, seq_ref, out_ref,
                      m_scr, l_scr, acc_scr, *, n_valid):
    j = pl.program_id(1)

    @pl.when(j == 0)
    def _():
        m_scr[...] = jnp.full_like(m_scr, -jnp.inf)
        l_scr[...] = jnp.zeros_like(l_scr)
        acc_scr[...] = jnp.zeros_like(acc_scr)

    # 0/1 adjacency streamed as int8: a select replaces upcast + two multiplies.
    #   adj*f1 + adj*f2.T == adj*(f1 + f2.T) == where(adj != 0, f1 + f2.T, 0)
    gate = adj_ref[...] != 0                                      # (TM, TN)
    logits = jnp.where(gate, f1_ref[...] + f2_ref[...], 0.0)      # (TM, TN) f32
    lrelu = jnp.maximum(logits, 0.01 * logits)                    # leaky_relu

    # Online softmax across the column-block ("arbitrary") axis.
    m_old = m_scr[...]                                            # (TM, 1)
    m_new = jnp.maximum(m_old, jnp.max(lrelu, axis=1, keepdims=True))
    alpha = jnp.exp(m_old - m_new)
    p = jnp.exp(lrelu - m_new)

    if n_valid is not None:     # static decision: mask host-padding columns
        tn = adj_ref.shape[1]
        col = j * tn + jax.lax.broadcasted_iota(jnp.int32, p.shape, 1)
        p = jnp.where(col < n_valid, p, 0.0)

    l_scr[...] = alpha * l_scr[...] + jnp.sum(p, axis=1, keepdims=True)
    # Numerator matmul in bf16 (flash-attention style), f32 accumulation.
    acc_scr[...] = alpha * acc_scr[...] + jnp.dot(
        p.astype(seq_ref.dtype), seq_ref[...],
        preferred_element_type=jnp.float32)
    m_scr[...] = m_new

    @pl.when(j == pl.num_programs(1) - 1)
    def _():
        out_ref[...] = (acc_scr[...] * pl.reciprocal(l_scr[...], approx=True)
                        ).astype(out_ref.dtype)


def node_attention(x, adj, w1, w2, b2, w3, b3, *, interpret=False):
    """Pallas forward of NodeAttention (assumes a 0/1 adjacency matrix)."""
    n, embed_dim = x.shape
    out_sz = w1.shape[1]

    # Lane-dense feature width; the two "f" columns hide in the zero padding.
    fpad = max(128, _round_up(out_sz, 128))
    fcat = fpad if out_sz + 2 <= fpad else fpad + 128

    x = x.astype(jnp.float32)
    w1 = w1.astype(jnp.float32)
    # Fused projection weights:  Wcat = [W1 | 0 ... 0 | W1@W2 | W1@W3]
    u2 = jnp.dot(w1, w2.astype(jnp.float32))                      # (E, 1)
    u3 = jnp.dot(w1, w3.astype(jnp.float32))                      # (E, 1)
    wcat = jnp.zeros((embed_dim, fcat), jnp.float32)
    wcat = wcat.at[:, :out_sz].set(w1)
    wcat = wcat.at[:, fcat - 2:fcat - 1].set(u2)
    wcat = wcat.at[:, fcat - 1:fcat].set(u3)

    # ---- pass 1: fused projection  proj = x @ Wcat  -> (N, Fcat) ------------
    # Tiling decoupled from the attention pass (small standard GEMM).
    tm1 = n if n <= 1024 else 1024
    proj = pl.pallas_call(
        _projection_kernel,
        out_shape=jax.ShapeDtypeStruct((n, fcat), jnp.float32),
        grid=(_cdiv(n, tm1),),
        in_specs=[
            pl.BlockSpec((tm1, embed_dim), lambda i: (i, 0)),
            pl.BlockSpec((embed_dim, fcat), lambda i: (0, 0)),
        ],
        out_specs=pl.BlockSpec((tm1, fcat), lambda i: (i, 0)),
        compiler_params=pltpu.CompilerParams(
            dimension_semantics=("parallel",)),
        interpret=interpret,
    )(x, wcat)

    budget = _vmem_budget_bytes()
    tm, tn = _pick_tiles(n, fcat, budget)
    n_pad_r = _round_up(n, tm)
    n_pad_c = _round_up(n, tn)

    # f1 column (biases folded in) and f2 row; the transpose happens ONCE here.
    bias = (jnp.asarray(b2, jnp.float32).reshape(()) +
            jnp.asarray(b3, jnp.float32).reshape(()))
    f1_col = proj[:, fcat - 2:fcat - 1] + bias                    # (N, 1)
    f2_row = proj[:, fcat - 1].reshape(1, n)                      # (1, N)
    f1_col = jnp.pad(f1_col, ((0, n_pad_r - n), (0, 0)))
    f2_row = jnp.pad(f2_row, ((0, 0), (0, n_pad_c - n)))

    # seq_fts slab in bf16 (half the bytes / native MXU rate), zero row pad.
    seq_bf16 = jnp.pad(proj, ((0, n_pad_c - n), (0, 0))).astype(jnp.bfloat16)

    # adjacency streamed as int8 0/1, zero-padded to full tiles.
    adj_i8 = jnp.pad(adj.astype(jnp.int8),
                     ((0, n_pad_r - n), (0, n_pad_c - n)))

    kern = functools.partial(_attention_kernel,
                             n_valid=(n if n_pad_c != n else None))

    # ---- pass 2: row x column blocked attention with online softmax ---------
    out_padded = pl.pallas_call(
        kern,
        out_shape=jax.ShapeDtypeStruct((n_pad_r, fcat), jnp.float32),
        grid=(n_pad_r // tm, n_pad_c // tn),
        in_specs=[
            pl.BlockSpec((tm, tn), lambda i, j: (i, j)),       # adj tile (int8)
            pl.BlockSpec((tm, 1), lambda i, j: (i, 0)),        # f1 (+b2+b3) col
            pl.BlockSpec((1, tn), lambda i, j: (0, j)),        # f2 row slice
            pl.BlockSpec((tn, fcat), lambda i, j: (j, 0)),     # seq_fts (bf16)
        ],
        out_specs=pl.BlockSpec((tm, fcat), lambda i, j: (i, 0)),
        scratch_shapes=[
            pltpu.VMEM((tm, 1), jnp.float32),                  # running max m
            pltpu.VMEM((tm, 1), jnp.float32),                  # running sum l
            pltpu.VMEM((tm, fcat), jnp.float32),               # accumulator
        ],
        compiler_params=pltpu.CompilerParams(
            dimension_semantics=("parallel", "arbitrary"),
            vmem_limit_bytes=budget),
        interpret=interpret,
    )(adj_i8, f1_col, f2_row, seq_bf16)

    # Drop padding / helper columns -> (N, out_sz), matching the module.
    return out_padded[:n, :out_sz]


def node_attention_ref(x, adj, w1, w2, b2, w3, b3):
    """Pure-JAX reference mirroring the PyTorch forward."""
    seq_fts = x @ w1
    f1 = seq_fts @ w2 + b2[0, 0]
    f2 = seq_fts @ w3 + b3[0, 0]
    logits = adj * f1 + adj * f2.T
    lrelu = jnp.where(logits >= 0, logits, 0.01 * logits)
    coefs = jax.nn.softmax(lrelu, axis=1)
    return coefs @ seq_fts


if __name__ == "__main__":
    nb_nodes, embed_dim, out_sz = 64, 32, 16

    key = jax.random.PRNGKey(0)
    k_x, k_adj, k_w1, k_w2, k_b2, k_w3, k_b3 = jax.random.split(key, 7)

    x = jax.random.normal(k_x, (nb_nodes, embed_dim), dtype=jnp.float32)
    adj = (jax.random.uniform(k_adj, (nb_nodes, nb_nodes)) < 0.3).astype(jnp.float32)

    # deterministic "synthetic checkpoint" parameters
    w1 = jax.random.normal(k_w1, (embed_dim, out_sz), dtype=jnp.float32) * 0.1
    w2 = jax.random.normal(k_w2, (out_sz, 1), dtype=jnp.float32) * 0.1
    b2 = jax.random.normal(k_b2, (1, 1), dtype=jnp.float32) * 0.1
    w3 = jax.random.normal(k_w3, (out_sz, 1), dtype=jnp.float32) * 0.1
    b3 = jax.random.normal(k_b3, (1, 1), dtype=jnp.float32) * 0.1

    out = node_attention(x, adj, w1, w2, b2, w3, b3)
    out = jax.block_until_ready(out)

    ref = node_attention_ref(x, adj, w1, w2, b2, w3, b3)
    assert out.shape == (nb_nodes, out_sz)
    # bf16 seq slab / bf16 softmax numerator / approx reciprocal -> relaxed
    # tolerance vs the f32 reference (per review guidance).
    assert jnp.allclose(out, ref, atol=2e-2, rtol=2e-2), "mismatch vs reference"

    print("KERNEL_OK")
</pallas_src>

<mosaic_0001>
module attributes {stable_mosaic.version = 11 : i64} {
  func.func @_projection_kernel(%arg0: i32, %arg1: memref<64x32xf32, #tpu.memory_space<vmem>>, %arg2: memref<32x128xf32, #tpu.memory_space<vmem>>, %arg3: memref<64x128xf32, #tpu.memory_space<vmem>>) attributes {dimension_semantics = [#tpu.dimension_semantics<parallel>], iteration_bounds = array<i64: 1>, scalar_prefetch = 0 : i64, scratch_operands = 0 : i64, tpu.core_type = #tpu.core_type<tc>, window_params = [{transform_indices = @transform_0, window_bounds = array<i64: 64, 32>}, {pipeline_mode = #tpu.pipeline_mode<synchronous>, transform_indices = @transform_1, window_bounds = array<i64: 32, 128>}, {transform_indices = @transform_2, window_bounds = array<i64: 64, 128>}]} {
    %c0 = arith.constant 0 : index
    %c0_0 = arith.constant 0 : index
    %0 = vector.load %arg1[%c0, %c0_0] : memref<64x32xf32, #tpu.memory_space<vmem>>, vector<64x32xf32>
    %c0_1 = arith.constant 0 : index
    %c0_2 = arith.constant 0 : index
    %1 = vector.load %arg2[%c0_1, %c0_2] : memref<32x128xf32, #tpu.memory_space<vmem>>, vector<32x128xf32>
    %cst = arith.constant dense<0.000000e+00> : vector<64x128xf32>
    %2 = tpu.matmul %0, %1, %cst {dimension_numbers = #tpu.dot_dimension_numbers<[1], [0], [0], [1], [0, 0, 1, 1], [], []>} : vector<64x32xf32>, vector<32x128xf32>, vector<64x128xf32> -> vector<64x128xf32>
    %c0_3 = arith.constant 0 : index
    %c0_4 = arith.constant 0 : index
    %3 = vector.load %arg3[%c0_3, %c0_4] : memref<64x128xf32, #tpu.memory_space<vmem>>, vector<64x128xf32>
    tpu.vector_store %arg3[%c0_3, %c0_4], %2 {strides = array<i32>} : memref<64x128xf32, #tpu.memory_space<vmem>>, vector<64x128xf32>,
    return
  }
  func.func @transform_0(%arg0: i32) -> (i32, i32) {
    %c0_i32 = arith.constant 0 : i32
    %c0_i32_0 = arith.constant 0 : i32
    return %arg0, %c0_i32 : i32, i32
  }
  func.func @transform_1(%arg0: i32) -> (i32, i32) {
    %c0_i32 = arith.constant 0 : i32
    %c0_i32_0 = arith.constant 0 : i32
    %c0_i32_1 = arith.constant 0 : i32
    return %c0_i32, %c0_i32_0 : i32, i32
  }
  func.func @transform_2(%arg0: i32) -> (i32, i32) {
    %c0_i32 = arith.constant 0 : i32
    %c0_i32_0 = arith.constant 0 : i32
    return %arg0, %c0_i32 : i32, i32
  }
}

</mosaic_0001>

<llo_original>
// kernel: tpu_custom_call.1
$region0: #{tpu_custom_call.1}
  #allocation0 [shape = 'u32[]', space=smem, size = 0x4, offset = 0x4, fixed_abs, tag = 'smem constant byte address 0x4 - core index']
  #allocation1 [shape = 'u32[72,128]{1,0:T(1,128)}', space=vmem, size = 0x9000, scoped, tag = 'internal scratch']
  %s0 = inlined_call_operand.vmem [shape: f32[64,32], index: 0, kind: input, shape index: {}]
  %s1 = inlined_call_operand.vmem [shape: f32[32,128], index: 1, kind: input, shape index: {}]
  %s2 = inlined_call_operand.hbm [shape: f32[64,128], index: 2, kind: output, shape index: {}]
  %s3 = sld [smem:[#allocation0]]
  $region18: #{tpu_custom_call.1} parent=0
    _
  %s5 = ssub.s32 1, %s3
  %s6 = scalar_select 0, %s5, %s3
  $region1: #{tpu_custom_call.1} parent=0
    #allocation2 [shape = 'u8[32768]{0}', space=vmem, size = 0x8000, scoped, tag = 'output window, operand 0, single buffered']
    #allocation3 [shape = 's32[1]{0}', space=sflag, size = 0x4, scoped, tag = 'scoped memory for tpu_custom_call.1']
    %7 = vsyncpa [#allocation3], 0
    // Predicated region
    $region2: #{tpu_custom_call.1} parent=1 // pred_check
      _
    $region3: #{tpu_custom_call.1} parent=1 // pred_check_branch
      %9 = sbr.rel (0) target = $region5
    $region4: #{tpu_custom_call.1} parent=1 // pred_region
      _
    $region5: #{tpu_custom_call.1} parent=1 // pred_fallthru
      _
    // Predicated region
    $region6: #{tpu_custom_call.1} parent=1 // pred_check
      _
    $region7: #{tpu_custom_call.1} parent=1 // pred_check_branch
      %11 = sbr.rel (0) target = $region9
    $region8: #{tpu_custom_call.1} parent=1 // pred_region
      _
    $region9: #{tpu_custom_call.1} parent=1 // pred_fallthru
      _
    %v12 = vld [vmem:[%s0] sm:$0xff]
    %v13 = vld [vmem:[%s0 + $0x8] sm:$0xff]
    %v14 = vld [vmem:[%s0 + $0x10] sm:$0xff]
    %v15 = vld [vmem:[%s0 + $0x18] sm:$0xff]
    %v16 = vld [vmem:[%s0 + $0x20] sm:$0xff]
    %v17 = vld [vmem:[%s0 + $0x28] sm:$0xff]
    %v18 = vld [vmem:[%s0 + $0x30] sm:$0xff]
    %v19 = vld [vmem:[%s0 + $0x38] sm:$0xff]
    %v20 = vld [vmem:[%s1] sm:$0xff]
    %v21 = vld [vmem:[%s1 + $0x8] sm:$0xff]
    %v22 = vld [vmem:[%s1 + $0x10] sm:$0xff]
    %v23 = vld [vmem:[%s1 + $0x18] sm:$0xff]
    %vm24 = vcmask 261120
    %v26 = vsel %vm24, %v12, 0
    %v29 = vsel %vm24, %v13, 0
    %v32 = vsel %vm24, %v14, 0
    %v35 = vsel %vm24, %v15, 0
    %v38 = vsel %vm24, %v16, 0
    %v41 = vsel %vm24, %v17, 0
    %v44 = vsel %vm24, %v18, 0
    %v47 = vsel %vm24, %v19, 0
    %49 = vmatpush.msra.mxu0 0.0
    %50 = vmatpush.msra.mxu0 0.0
    %51 = vmatpush.msra.mxu0 0.0
    %52 = vmatpush.msra.mxu0 0.0
    %53 = vmatpush.msra.mxu0 0.0
    %54 = vmatpush.msra.mxu0 0.0
    %55 = vmatpush.msra.mxu0 0.0
    %56 = vmatpush.msra.mxu0 0.0
    %57 = vmatpush.msra.mxu0 0.0
    %58 = vmatpush.msra.mxu0 0.0
    %59 = vmatpush.msra.mxu0 0.0
    %60 = vmatpush.msra.mxu0 0.0
    %61 = vmatpush.msra.mxu0 %v23
    %62 = vmatpush.msra.mxu0 %v22
    %63 = vmatpush.msra.mxu0 %v21
    %64 = vmatpush.msra.mxu0 %v20
    %65 = vmatmul.f32.gmra.mxu0 %v26
    %v66 = vpop.f32.mrf.mxu0
    %v67 = vadd.f32 0.0, %v66
    %68 = vmatmul.f32.gmra.mxu0 %v29
    %v69 = vpop.f32.mrf.mxu0
    %v70 = vadd.f32 0.0, %v69
    %71 = vmatmul.f32.gmra.mxu0 %v32
    %v72 = vpop.f32.mrf.mxu0
    %v73 = vadd.f32 0.0, %v72
    %74 = vmatmul.f32.gmra.mxu0 %v35
    %v75 = vpop.f32.mrf.mxu0
    %v76 = vadd.f32 0.0, %v75
    %77 = vmatmul.f32.gmra.mxu0 %v38
    %v78 = vpop.f32.mrf.mxu0
    %v79 = vadd.f32 0.0, %v78
    %80 = vmatmul.f32.gmra.mxu0 %v41
    %v81 = vpop.f32.mrf.mxu0
    %v82 = vadd.f32 0.0, %v81
    %83 = vmatmul.f32.gmra.mxu0 %v44
    %v84 = vpop.f32.mrf.mxu0
    %v85 = vadd.f32 0.0, %v84
    %86 = vmatmul.f32.gmra.mxu0 %v47
    %v87 = vpop.f32.mrf.mxu0
    %v88 = vadd.f32 0.0, %v87
    %89 = vdwg.mxu0
    %90 = vst [vmem:[#allocation2] sm:$0xff] %v67
    %91 = vst [vmem:[#allocation2 + $0x8] sm:$0xff] %v70
    %92 = vst [vmem:[#allocation2 + $0x10] sm:$0xff] %v73
    %93 = vst [vmem:[#allocation2 + $0x18] sm:$0xff] %v76
    %94 = vst [vmem:[#allocation2 + $0x20] sm:$0xff] %v79
    %95 = vst [vmem:[#allocation2 + $0x28] sm:$0xff] %v82
    %96 = vst [vmem:[#allocation2 + $0x30] sm:$0xff] %v85
    %97 = vst [vmem:[#allocation2 + $0x38] sm:$0xff] %v88
    // Predicated region
    $region10: #{tpu_custom_call.1} parent=1 // pred_check
      _
    $region11: #{tpu_custom_call.1} parent=1 // pred_check_branch
      %99 = sbr.rel (0) target = $region13
    $region12: #{tpu_custom_call.1} parent=1 // pred_region
      %101 = vsyncadd [#allocation3], 0
      %s102 = sshll.u32 [#allocation2], 4
      %s103 = int_to_ptr.vmem [resolvable:$true] %s102
      %s104 = sshll.u32 %s2, 4
      %s105 = int_to_ptr.hbm [resolvable:$true] %s104
      %110 = dma.vmem_to_hbm [thread:$0]  %s103, 1024, %s105, [#allocation3], 128, 128, 8
    $region13: #{tpu_custom_call.1} parent=1 // pred_fallthru
      _
    // Predicated region
    $region14: #{tpu_custom_call.1} parent=1 // pred_check
      _
    $region15: #{tpu_custom_call.1} parent=1 // pred_check_branch
      %112 = sbr.rel (0) target = $region17
    $region16: #{tpu_custom_call.1} parent=1 // pred_region
      %114 = dma.done [#allocation3], 1024
    $region17: #{tpu_custom_call.1} parent=1 // pred_fallthru
      _
    %115 = vsyncpa [#allocation3], 1

</llo_original>
